<compile_context>
chip_gen: v7x
topology: tpu7x:2x2x1
jax: 0.10.0
libtpu: 0.0.40
codegen_flags: <defaults>
</compile_context>

<pallas_src>
import jax
import jax.numpy as jnp
from jax.experimental import pallas as pl
from jax.experimental.pallas import tpu as pltpu


def _fused_linear_kernel(x1_ref, x2_ref, x3_ref, w_ref, b_ref, o_ref):
    # x1/x2/x3_ref: (tm, IN)   w_ref: (IN, tn)   b_ref: (1, tn)   o_ref: (tm, tn)
    w = w_ref[...]
    b = b_ref[...]
    tm = x1_ref.shape[0]

    if tm % 8 == 0:
        # Sublane-aligned in-kernel concat -> single MXU pass (one weight load)
        # for all three shared-weight linears; slices below stay 8-row aligned.
        xf = jnp.concatenate([x1_ref[...], x2_ref[...], x3_ref[...]], axis=0)
        y = jnp.dot(xf, w, preferred_element_type=jnp.float32) + b
        v1 = y[0 * tm:1 * tm]
        t2 = y[1 * tm:2 * tm]
        v4 = y[2 * tm:3 * tm]
    else:
        # Tiny / ragged batch tile (e.g. B=2): avoid unaligned sublane slices
        # by issuing three dots against the same VMEM-resident weight tile.
        v1 = jnp.dot(x1_ref[...], w, preferred_element_type=jnp.float32) + b
        t2 = jnp.dot(x2_ref[...], w, preferred_element_type=jnp.float32) + b
        v4 = jnp.dot(x3_ref[...], w, preferred_element_type=jnp.float32) + b

    # clamp(tanh(t2)+3, 0, 6) == tanh(t2)+3 since tanh in (-1, 1); the two /6
    # divisions fold into a single *(1/36).
    gate = jnp.tanh(t2) + 3.0
    o_ref[...] = (v1 * gate * v4 * (1.0 / 36.0)).astype(o_ref.dtype)


def _pick_tile(total, unit, cap, prefer_unit=None):
    """Largest multiple-of-`unit` divisor of `total` that is <= cap.

    Prefers multiples of `prefer_unit` (e.g. 256 for the MXU lane axis).
    Assumes total % unit == 0 when total > cap.
    """
    if total <= cap:
        return total
    blocks = total // unit
    cap_b = max(1, cap // unit)
    divs = [d for d in range(1, cap_b + 1) if blocks % d == 0]
    best = max(divs) * unit
    if prefer_unit:
        pref = [d * unit for d in divs if (d * unit) % prefer_unit == 0]
        if pref:
            best = max(pref)
    return best


def fused_model(x1, x2, x3, w, b, *, tm_max=512, tn_max=512):
    """Pallas implementation of Model.forward.

    x1, x2, x3: (B, IN) float32
    w: (IN, OUT) float32   (transposed PyTorch weight)
    b: (OUT,)    float32
    returns (B, OUT) float32
    """
    B, IN = x1.shape
    OUT = w.shape[1]

    # Batch tile: full extent if it fits, else an 8-aligned divisor of B.
    if B <= tm_max:
        tm = B
    elif B % 8 == 0:
        tm = _pick_tile(B, 8, tm_max)
    else:
        tm = B  # TODO(synk): ragged large-batch tiling (pad or BoundedSlice).

    # OUT tile: divisor of OUT at 128-lane granularity (prefer 256 for the
    # 2x256^2 MXU); full extent when OUT is not lane-aligned (tiny OUT).
    if OUT % 128 == 0:
        tn = _pick_tile(OUT, 128, tn_max, prefer_unit=256)
    else:
        tn = OUT  # full-extent lane dim is always legal; masked stores only.

    b2 = b.reshape(1, OUT)

    # Double-buffered per-step footprint (f32): 3 activation tiles + weight
    # tile + bias + output tile.  Set the scoped-VMEM limit explicitly so the
    # 2-deep pipeline survives on v5e (16 MiB default); cap at 64 MiB so the
    # request is valid on v7x as well.
    blk_bytes = 4 * (3 * tm * IN + IN * tn + tn + tm * tn)
    vmem_limit = int(min(64 * 1024 * 1024, max(32 * 1024 * 1024,
                                               2 * blk_bytes + (2 << 20))))
    # TODO(synk): for very large IN add a third ("arbitrary", innermost) grid
    # axis over K with an f32 VMEM accumulator + pl.when init/finalize; IN is
    # kept whole here (IN=10 in the spec).

    # Grid = (OUT tiles, B tiles): batch axis is innermost (fastest), so the
    # shared-weight block index is unchanged across consecutive steps and the
    # weight stays VMEM-resident (one HBM read per OUT tile).
    grid = (OUT // tn, B // tm)

    out = pl.pallas_call(
        _fused_linear_kernel,
        out_shape=jax.ShapeDtypeStruct((B, OUT), jnp.float32),
        grid=grid,
        in_specs=[
            pl.BlockSpec((tm, IN), lambda j, i: (i, 0)),   # x1
            pl.BlockSpec((tm, IN), lambda j, i: (i, 0)),   # x2
            pl.BlockSpec((tm, IN), lambda j, i: (i, 0)),   # x3
            pl.BlockSpec((IN, tn), lambda j, i: (0, j)),   # shared weight
            pl.BlockSpec((1, tn), lambda j, i: (0, j)),    # bias
        ],
        out_specs=pl.BlockSpec((tm, tn), lambda j, i: (i, j)),
        compiler_params=pltpu.CompilerParams(
            dimension_semantics=("parallel", "parallel"),
            vmem_limit_bytes=vmem_limit),
    )(x1, x2, x3, w, b2)

    return out


def reference(x1, x2, x3, w, b):
    v1 = x1 @ w + b
    v2 = v1 * jnp.clip(jnp.tanh(x2 @ w + b) + 3.0, 0.0, 6.0)
    v3 = v2 / 6.0
    v4 = x3 @ w + b
    v5 = v4 / 6.0
    return v3 * v5


if __name__ == "__main__":
    key = jax.random.PRNGKey(0)
    k1, k2, k3, kw, kb = jax.random.split(key, 5)

    B, IN, OUT = 2, 10, 20
    x1 = jax.random.normal(k1, (B, IN), dtype=jnp.float32)
    x2 = jax.random.normal(k2, (B, IN), dtype=jnp.float32)
    x3 = jax.random.normal(k3, (B, IN), dtype=jnp.float32)

    # Deterministic "Linear(10, 20)" parameters (kaiming-uniform-ish range).
    bound = 1.0 / (IN ** 0.5)
    w = jax.random.uniform(kw, (IN, OUT), minval=-bound, maxval=bound,
                           dtype=jnp.float32)
    b = jax.random.uniform(kb, (OUT,), minval=-bound, maxval=bound,
                           dtype=jnp.float32)

    out = fused_model(x1, x2, x3, w, b)
    jax.block_until_ready(out)

    ref = reference(x1, x2, x3, w, b)
    assert out.shape == (B, OUT)
    assert jnp.allclose(out, ref, atol=1e-5, rtol=1e-5), "mismatch vs reference"
    print("KERNEL_OK")
</pallas_src>

<mosaic_0001>
module attributes {stable_mosaic.version = 11 : i64} {
  func.func @_fused_linear_kernel(%arg0: i32, %arg1: i32, %arg2: memref<2x10xf32, #tpu.memory_space<vmem>>, %arg3: memref<2x10xf32, #tpu.memory_space<vmem>>, %arg4: memref<2x10xf32, #tpu.memory_space<vmem>>, %arg5: memref<10x20xf32, #tpu.memory_space<vmem>>, %arg6: memref<1x20xf32, #tpu.memory_space<vmem>>, %arg7: memref<2x20xf32, #tpu.memory_space<vmem>>) attributes {dimension_semantics = [#tpu.dimension_semantics<parallel>, #tpu.dimension_semantics<parallel>], iteration_bounds = array<i64: 1, 1>, scalar_prefetch = 0 : i64, scratch_operands = 0 : i64, tpu.core_type = #tpu.core_type<tc>, window_params = [{transform_indices = @transform_0, window_bounds = array<i64: 2, 10>}, {transform_indices = @transform_1, window_bounds = array<i64: 2, 10>}, {transform_indices = @transform_2, window_bounds = array<i64: 2, 10>}, {transform_indices = @transform_3, window_bounds = array<i64: 10, 20>}, {transform_indices = @transform_4, window_bounds = array<i64: 1, 20>}, {transform_indices = @transform_5, window_bounds = array<i64: 2, 20>}]} {
    %c0 = arith.constant 0 : index
    %c0_0 = arith.constant 0 : index
    %0 = vector.load %arg5[%c0, %c0_0] : memref<10x20xf32, #tpu.memory_space<vmem>>, vector<10x20xf32>
    %c0_1 = arith.constant 0 : index
    %c0_2 = arith.constant 0 : index
    %1 = vector.load %arg6[%c0_1, %c0_2] : memref<1x20xf32, #tpu.memory_space<vmem>>, vector<1x20xf32>
    %c0_3 = arith.constant 0 : index
    %c0_4 = arith.constant 0 : index
    %2 = vector.load %arg2[%c0_3, %c0_4] : memref<2x10xf32, #tpu.memory_space<vmem>>, vector<2x10xf32>
    %cst = arith.constant dense<0.000000e+00> : vector<2x20xf32>
    %3 = tpu.matmul %2, %0, %cst {dimension_numbers = #tpu.dot_dimension_numbers<[1], [0], [0], [1], [0, 0, 1, 1], [], []>} : vector<2x10xf32>, vector<10x20xf32>, vector<2x20xf32> -> vector<2x20xf32>
    %4 = vector.broadcast %1 : vector<1x20xf32> to vector<2x20xf32>
    %5 = arith.addf %3, %4 : vector<2x20xf32>
    %c0_5 = arith.constant 0 : index
    %c0_6 = arith.constant 0 : index
    %6 = vector.load %arg3[%c0_5, %c0_6] : memref<2x10xf32, #tpu.memory_space<vmem>>, vector<2x10xf32>
    %cst_7 = arith.constant dense<0.000000e+00> : vector<2x20xf32>
    %7 = tpu.matmul %6, %0, %cst_7 {dimension_numbers = #tpu.dot_dimension_numbers<[1], [0], [0], [1], [0, 0, 1, 1], [], []>} : vector<2x10xf32>, vector<10x20xf32>, vector<2x20xf32> -> vector<2x20xf32>
    %8 = vector.broadcast %1 : vector<1x20xf32> to vector<2x20xf32>
    %9 = arith.addf %7, %8 : vector<2x20xf32>
    %c0_8 = arith.constant 0 : index
    %c0_9 = arith.constant 0 : index
    %10 = vector.load %arg4[%c0_8, %c0_9] : memref<2x10xf32, #tpu.memory_space<vmem>>, vector<2x10xf32>
    %cst_10 = arith.constant dense<0.000000e+00> : vector<2x20xf32>
    %11 = tpu.matmul %10, %0, %cst_10 {dimension_numbers = #tpu.dot_dimension_numbers<[1], [0], [0], [1], [0, 0, 1, 1], [], []>} : vector<2x10xf32>, vector<10x20xf32>, vector<2x20xf32> -> vector<2x20xf32>
    %12 = vector.broadcast %1 : vector<1x20xf32> to vector<2x20xf32>
    %13 = arith.addf %11, %12 : vector<2x20xf32>
    %14 = math.tanh %9 : vector<2x20xf32>
    %cst_11 = arith.constant 3.000000e+00 : f32
    %15 = vector.broadcast %cst_11 : f32 to vector<2x20xf32>
    %16 = arith.addf %14, %15 : vector<2x20xf32>
    %17 = arith.mulf %5, %16 : vector<2x20xf32>
    %18 = arith.mulf %17, %13 : vector<2x20xf32>
    %cst_12 = arith.constant 0.027777778 : f32
    %19 = vector.broadcast %cst_12 : f32 to vector<2x20xf32>
    %20 = arith.mulf %18, %19 : vector<2x20xf32>
    %c0_13 = arith.constant 0 : index
    %c0_14 = arith.constant 0 : index
    %21 = vector.load %arg7[%c0_13, %c0_14] : memref<2x20xf32, #tpu.memory_space<vmem>>, vector<2x20xf32>
    tpu.vector_store %arg7[%c0_13, %c0_14], %20 {strides = array<i32>} : memref<2x20xf32, #tpu.memory_space<vmem>>, vector<2x20xf32>,
    return
  }
  func.func @transform_0(%arg0: i32, %arg1: i32) -> (i32, i32) {
    %c0_i32 = arith.constant 0 : i32
    %c0_i32_0 = arith.constant 0 : i32
    return %arg1, %c0_i32 : i32, i32
  }
  func.func @transform_1(%arg0: i32, %arg1: i32) -> (i32, i32) {
    %c0_i32 = arith.constant 0 : i32
    %c0_i32_0 = arith.constant 0 : i32
    return %arg1, %c0_i32 : i32, i32
  }
  func.func @transform_2(%arg0: i32, %arg1: i32) -> (i32, i32) {
    %c0_i32 = arith.constant 0 : i32
    %c0_i32_0 = arith.constant 0 : i32
    return %arg1, %c0_i32 : i32, i32
  }
  func.func @transform_3(%arg0: i32, %arg1: i32) -> (i32, i32) {
    %c0_i32 = arith.constant 0 : i32
    %c0_i32_0 = arith.constant 0 : i32
    return %c0_i32, %arg0 : i32, i32
  }
  func.func @transform_4(%arg0: i32, %arg1: i32) -> (i32, i32) {
    %c0_i32 = arith.constant 0 : i32
    %c0_i32_0 = arith.constant 0 : i32
    return %c0_i32, %arg0 : i32, i32
  }
  func.func @transform_5(%arg0: i32, %arg1: i32) -> (i32, i32) {
    %c0_i32 = arith.constant 0 : i32
    return %arg1, %arg0 : i32, i32
  }
}

</mosaic_0001>

<llo_original>
// kernel: tpu_custom_call.1
$region0: #{tpu_custom_call.1}
  #allocation0 [shape = 'u32[]', space=smem, size = 0x4, offset = 0x4, fixed_abs, tag = 'smem constant byte address 0x4 - core index']
  #allocation1 [shape = 'u32[144,128]{1,0:T(1,128)}', space=vmem, size = 0x12000, scoped, tag = 'internal scratch']
  %s0 = inlined_call_operand.hbm [shape: f32[2,10], index: 0, kind: input, shape index: {}]
  %s1 = inlined_call_operand.vmem [shape: f32[2,10], index: 1, kind: input, shape index: {}]
  %s2 = inlined_call_operand.vmem [shape: f32[2,10], index: 2, kind: input, shape index: {}]
  %s3 = inlined_call_operand.hbm [shape: f32[10,20], index: 3, kind: input, shape index: {}]
  %s4 = inlined_call_operand.vmem [shape: f32[1,20], index: 4, kind: input, shape index: {}]
  %s5 = inlined_call_operand.hbm [shape: f32[2,20], index: 5, kind: output, shape index: {}]
  %s6 = sld [smem:[#allocation0]]
  $region38: #{tpu_custom_call.1} parent=0
    _
  %s8 = ssub.s32 1, %s6
  %s9 = scalar_select 0, %s8, %s6
  $region1: #{tpu_custom_call.1} parent=0
    #allocation2 [shape = 'u8[1024]{0}', space=vmem, size = 0x400, scoped, tag = 'input window, operand 0, single buffered']
    #allocation3 [shape = 's32[1]{0}', space=sflag, size = 0x4, scoped, tag = 'scoped memory for tpu_custom_call.1']
    #allocation4 [shape = 's32[1]{0}', space=sflag, size = 0x4, scoped, tag = 'scoped memory for tpu_custom_call.1']
    #allocation5 [shape = 'u8[8192]{0}', space=vmem, size = 0x2000, scoped, tag = 'input window, operand 3, single buffered']
    #allocation6 [shape = 's32[1]{0}', space=sflag, size = 0x4, scoped, tag = 'scoped memory for tpu_custom_call.1']
    #allocation7 [shape = 'u8[1024]{0}', space=vmem, size = 0x400, scoped, tag = 'output window, operand 0, single buffered']
    %10 = vsyncpa [#allocation3], 0
    %11 = vsyncpa [#allocation6], 0
    %12 = vsyncpa [#allocation4], 0
    // Predicated region
    $region2: #{tpu_custom_call.1} parent=1 // pred_check
      _
    $region3: #{tpu_custom_call.1} parent=1 // pred_check_branch
      %14 = sbr.rel (0) target = $region5
    $region4: #{tpu_custom_call.1} parent=1 // pred_region
      %s16 = ssub.s32 32, 32
      %17 = vsyncadd [#allocation3], %s16
      %s19 = sshll.u32 [#allocation2], 4
      %s20 = int_to_ptr.vmem [resolvable:$true] %s19
      %22 = dma.hbm_to_vmem [thread:$0]  %s0, 32, %s20, [#allocation3]
    $region5: #{tpu_custom_call.1} parent=1 // pred_fallthru
      _
    // Predicated region
    $region6: #{tpu_custom_call.1} parent=1 // pred_check
      _
    $region7: #{tpu_custom_call.1} parent=1 // pred_check_branch
      %24 = sbr.rel (0) target = $region9
    $region8: #{tpu_custom_call.1} parent=1 // pred_region
      _
    $region9: #{tpu_custom_call.1} parent=1 // pred_fallthru
      _
    // Predicated region
    $region10: #{tpu_custom_call.1} parent=1 // pred_check
      _
    $region11: #{tpu_custom_call.1} parent=1 // pred_check_branch
      %26 = sbr.rel (0) target = $region13
    $region12: #{tpu_custom_call.1} parent=1 // pred_region
      _
    $region13: #{tpu_custom_call.1} parent=1 // pred_fallthru
      _
    // Predicated region
    $region14: #{tpu_custom_call.1} parent=1 // pred_check
      _
    $region15: #{tpu_custom_call.1} parent=1 // pred_check_branch
      %28 = sbr.rel (0) target = $region17
    $region16: #{tpu_custom_call.1} parent=1 // pred_region
      %s30 = ssub.s32 256, 256
      %31 = vsyncadd [#allocation6], %s30
      %s32 = sshll.u32 [#allocation5], 4
      %s33 = int_to_ptr.vmem [resolvable:$true] %s32
      %38 = dma.hbm_to_vmem [thread:$0]  %s3, 256, %s33, [#allocation6], 128, 128, 8
    $region17: #{tpu_custom_call.1} parent=1 // pred_fallthru
      _
    // Predicated region
    $region18: #{tpu_custom_call.1} parent=1 // pred_check
      _
    $region19: #{tpu_custom_call.1} parent=1 // pred_check_branch
      %40 = sbr.rel (0) target = $region21
    $region20: #{tpu_custom_call.1} parent=1 // pred_region
      _
    $region21: #{tpu_custom_call.1} parent=1 // pred_fallthru
      _
    // Predicated region
    $region22: #{tpu_custom_call.1} parent=1 // pred_check
      _
    $region23: #{tpu_custom_call.1} parent=1 // pred_check_branch
      %42 = sbr.rel (0) target = $region25
    $region24: #{tpu_custom_call.1} parent=1 // pred_region
      %43 = dma.done [#allocation3], 32
    $region25: #{tpu_custom_call.1} parent=1 // pred_fallthru
      _
    // Predicated region
    $region26: #{tpu_custom_call.1} parent=1 // pred_check
      _
    $region27: #{tpu_custom_call.1} parent=1 // pred_check_branch
      %45 = sbr.rel (0) target = $region29
    $region28: #{tpu_custom_call.1} parent=1 // pred_region
      %46 = dma.done [#allocation6], 256
    $region29: #{tpu_custom_call.1} parent=1 // pred_fallthru
      _
    %v47 = vld [vmem:[#allocation5] sm:$0xff]
    %v48 = vld [vmem:[#allocation5 + $0x8] sm:$0x3]
    %v49 = vld [vmem:[%s4] sm:$0x1]
    %v50 = vld [vmem:[#allocation2] sm:$0x3]
    %v52 = vlaneseq
    %v53 = vshrl.u32 %v52, 7
    %v54 = vsub.s32 0, %v53
    %v55 = vrot.slane %v49, %v54
    %vm57 = vcmask 80896
    %v59 = vsel %vm57, %v50, 0
    %vm61 = vcmask 1041408
    %v63 = vsel %vm61, %v48, 0
    %65 = vmatprep.subr.mxu0 0.0
    %66 = vmatpush1.msra.mxu0 %v47
    %67 = vmatprep.subr.mxu0 0.0
    %68 = vmatpush1.msra.mxu0 %v63
    %69 = vmatprep.subr.mxu0 0.0
    %70 = vmatpush1.msra.mxu0 0.0
    %71 = vmatprep.subr.mxu0 0.0
    %72 = vmatpush1.msra.mxu0 0.0
    %73 = vmatprep.subr.mxu0 0.0
    %74 = vmatpush1.msra.mxu0 0.0
    %75 = vmatprep.subr.mxu0 0.0
    %76 = vmatpush1.msra.mxu0 0.0
    %77 = vmatprep.subr.mxu0 0.0
    %78 = vmatpush1.msra.mxu0 0.0
    %79 = vmatprep.subr.mxu0 0.0
    %80 = vmatpush1.msra.mxu0 0.0
    %81 = vmatprep.subr.mxu0 0.0
    %82 = vmatpush1.msra.mxu0 0.0
    %83 = vmatprep.subr.mxu0 0.0
    %84 = vmatpush1.msra.mxu0 0.0
    %85 = vmatprep.subr.mxu0 0.0
    %86 = vmatpush1.msra.mxu0 0.0
    %87 = vmatprep.subr.mxu0 0.0
    %88 = vmatpush1.msra.mxu0 0.0
    %89 = vmatprep.subr.mxu0 0.0
    %90 = vmatpush1.msra.mxu0 0.0
    %91 = vmatprep.subr.mxu0 0.0
    %92 = vmatpush1.msra.mxu0 0.0
    %93 = vmatprep.subr.mxu0 0.0
    %94 = vmatpush1.msra.mxu0 0.0
    %95 = vmatprep.subr.mxu0 0.0
    %96 = vmatpush1.msra.mxu0 0.0
    %97 = vmatprep.subr.mxu0 0.0
    %98 = vmatpush1.msra.mxu0 0.0
    %99 = vmatprep.subr.mxu0 0.0
    %100 = vmatpush1.msra.mxu0 0.0
    %101 = vmatprep.subr.mxu0 0.0
    %102 = vmatpush1.msra.mxu0 0.0
    %103 = vmatprep.subr.mxu0 0.0
    %104 = vmatpush1.msra.mxu0 0.0
    %105 = vmatprep.subr.mxu0 0.0
    %106 = vmatpush1.msra.mxu0 0.0
    %107 = vmatprep.subr.mxu0 0.0
    %108 = vmatpush1.msra.mxu0 0.0
    %109 = vmatprep.subr.mxu0 0.0
    %110 = vmatpush1.msra.mxu0 0.0
    %111 = vmatprep.subr.mxu0 0.0
    %112 = vmatpush1.msra.mxu0 0.0
    %113 = vmatprep.subr.mxu0 0.0
    %114 = vmatpush1.msra.mxu0 0.0
    %115 = vmatprep.subr.mxu0 0.0
    %116 = vmatpush1.msra.mxu0 0.0
    %117 = vmatprep.subr.mxu0 0.0
    %118 = vmatpush1.msra.mxu0 0.0
    %119 = vmatprep.subr.mxu0 0.0
    %120 = vmatpush1.msra.mxu0 0.0
    %121 = vmatprep.subr.mxu0 0.0
    %122 = vmatpush1.msra.mxu0 0.0
    %123 = vmatprep.subr.mxu0 0.0
    %124 = vmatpush1.msra.mxu0 0.0
    %125 = vmatprep.subr.mxu0 0.0
    %126 = vmatpush1.msra.mxu0 0.0
    %127 = vmatprep.subr.mxu0 0.0
    %128 = vmatpush1.msra.mxu0 0.0
    %129 = vmatprep.mubr.f32.mxu0 0.0
    %130 = vmatmul.mubr.f32.gmra.mrb[0].mxu0 %v59
    %v131 = vpop.f32.mrb[0].mxu0
    %v132 = vadd.f32 %v55, %v131
    %v133 = vpop.f32.mrb[0].mxu0
    %134 = vdwg.mxu0
    %v135 = vld [vmem:[%s1] sm:$0x3]
    %v137 = vsel %vm57, %v135, 0
    %139 = vmatprep.subr.mxu0 0.0
    %140 = vmatpush1.msra.mxu0 %v47
    %141 = vmatprep.subr.mxu0 0.0
    %142 = vmatpush1.msra.mxu0 %v63
    %143 = vmatprep.subr.mxu0 0.0
    %144 = vmatpush1.msra.mxu0 0.0
    %145 = vmatprep.subr.mxu0 0.0
    %146 = vmatpush1.msra.mxu0 0.0
    %147 = vmatprep.subr.mxu0 0.0
    %148 = vmatpush1.msra.mxu0 0.0
    %149 = vmatprep.subr.mxu0 0.0
    %150 = vmatpush1.msra.mxu0 0.0
    %151 = vmatprep.subr.mxu0 0.0
    %152 = vmatpush1.msra.mxu0 0.0
    %153 = vmatprep.subr.mxu0 0.0
    %154 = vmatpush1.msra.mxu0 0.0
    %155 = vmatprep.subr.mxu0 0.0
    %156 = vmatpush1.msra.mxu0 0.0
    %157 = vmatprep.subr.mxu0 0.0
    %158 = vmatpush1.msra.mxu0 0.0
    %159 = vmatprep.subr.mxu0 0.0
    %160 = vmatpush1.msra.mxu0 0.0
    %161 = vmatprep.subr.mxu0 0.0
    %162 = vmatpush1.msra.mxu0 0.0
    %163 = vmatprep.subr.mxu0 0.0
    %164 = vmatpush1.msra.mxu0 0.0
    %165 = vmatprep.subr.mxu0 0.0
    %166 = vmatpush1.msra.mxu0 0.0
    %167 = vmatprep.subr.mxu0 0.0
    %168 = vmatpush1.msra.mxu0 0.0
    %169 = vmatprep.subr.mxu0 0.0
    %170 = vmatpush1.msra.mxu0 0.0
    %171 = vmatprep.subr.mxu0 0.0
    %172 = vmatpush1.msra.mxu0 0.0
    %173 = vmatprep.subr.mxu0 0.0
    %174 = vmatpush1.msra.mxu0 0.0
    %175 = vmatprep.subr.mxu0 0.0
    %176 = vmatpush1.msra.mxu0 0.0
    %177 = vmatprep.subr.mxu0 0.0
    %178 = vmatpush1.msra.mxu0 0.0
    %179 = vmatprep.subr.mxu0 0.0
    %180 = vmatpush1.msra.mxu0 0.0
    %181 = vmatprep.subr.mxu0 0.0
    %182 = vmatpush1.msra.mxu0 0.0
    %183 = vmatprep.subr.mxu0 0.0
    %184 = vmatpush1.msra.mxu0 0.0
    %185 = vmatprep.subr.mxu0 0.0
    %186 = vmatpush1.msra.mxu0 0.0
    %187 = vmatprep.subr.mxu0 0.0
    %188 = vmatpush1.msra.mxu0 0.0
    %189 = vmatprep.subr.mxu0 0.0
    %190 = vmatpush1.msra.mxu0 0.0
    %191 = vmatprep.subr.mxu0 0.0
    %192 = vmatpush1.msra.mxu0 0.0
    %193 = vmatprep.subr.mxu0 0.0
    %194 = vmatpush1.msra.mxu0 0.0
    %195 = vmatprep.subr.mxu0 0.0
    %196 = vmatpush1.msra.mxu0 0.0
    %197 = vmatprep.subr.mxu0 0.0
    %198 = vmatpush1.msra.mxu0 0.0
    %199 = vmatprep.subr.mxu0 0.0
    %200 = vmatpush1.msra.mxu0 0.0
    %201 = vmatprep.subr.mxu0 0.0
    %202 = vmatpush1.msra.mxu0 0.0
    %203 = vmatprep.mubr.f32.mxu0 0.0
    %204 = vmatmul.mubr.f32.gmra.mrb[0].mxu0 %v137
    %v205 = vpop.f32.mrb[0].mxu0
    %v206 = vadd.f32 %v55, %v205
    %v207 = vpop.f32.mrb[0].mxu0
    %208 = vdwg.mxu0
    %v209 = vld [vmem:[%s2] sm:$0x3]
    %v211 = vsel %vm57, %v209, 0
    %213 = vmatprep.subr.mxu0 0.0
    %214 = vmatpush1.msra.mxu0 %v47
    %215 = vmatprep.subr.mxu0 0.0
    %216 = vmatpush1.msra.mxu0 %v63
    %217 = vmatprep.subr.mxu0 0.0
    %218 = vmatpush1.msra.mxu0 0.0
    %219 = vmatprep.subr.mxu0 0.0
    %220 = vmatpush1.msra.mxu0 0.0
    %221 = vmatprep.subr.mxu0 0.0
    %222 = vmatpush1.msra.mxu0 0.0
    %223 = vmatprep.subr.mxu0 0.0
    %224 = vmatpush1.msra.mxu0 0.0
    %225 = vmatprep.subr.mxu0 0.0
    %226 = vmatpush1.msra.mxu0 0.0
    %227 = vmatprep.subr.mxu0 0.0
    %228 = vmatpush1.msra.mxu0 0.0
    %229 = vmatprep.subr.mxu0 0.0
    %230 = vmatpush1.msra.mxu0 0.0
    %231 = vmatprep.subr.mxu0 0.0
    %232 = vmatpush1.msra.mxu0 0.0
    %233 = vmatprep.subr.mxu0 0.0
    %234 = vmatpush1.msra.mxu0 0.0
    %235 = vmatprep.subr.mxu0 0.0
    %236 = vmatpush1.msra.mxu0 0.0
    %237 = vmatprep.subr.mxu0 0.0
    %238 = vmatpush1.msra.mxu0 0.0
    %239 = vmatprep.subr.mxu0 0.0
    %240 = vmatpush1.msra.mxu0 0.0
    %241 = vmatprep.subr.mxu0 0.0
    %242 = vmatpush1.msra.mxu0 0.0
    %243 = vmatprep.subr.mxu0 0.0
    %244 = vmatpush1.msra.mxu0 0.0
    %245 = vmatprep.subr.mxu0 0.0
    %246 = vmatpush1.msra.mxu0 0.0
    %247 = vmatprep.subr.mxu0 0.0
    %248 = vmatpush1.msra.mxu0 0.0
    %249 = vmatprep.subr.mxu0 0.0
    %250 = vmatpush1.msra.mxu0 0.0
    %251 = vmatprep.subr.mxu0 0.0
    %252 = vmatpush1.msra.mxu0 0.0
    %253 = vmatprep.subr.mxu0 0.0
    %254 = vmatpush1.msra.mxu0 0.0
    %255 = vmatprep.subr.mxu0 0.0
    %256 = vmatpush1.msra.mxu0 0.0
    %257 = vmatprep.subr.mxu0 0.0
    %258 = vmatpush1.msra.mxu0 0.0
    %259 = vmatprep.subr.mxu0 0.0
    %260 = vmatpush1.msra.mxu0 0.0
    %261 = vmatprep.subr.mxu0 0.0
    %262 = vmatpush1.msra.mxu0 0.0
    %263 = vmatprep.subr.mxu0 0.0
    %264 = vmatpush1.msra.mxu0 0.0
    %265 = vmatprep.subr.mxu0 0.0
    %266 = vmatpush1.msra.mxu0 0.0
    %267 = vmatprep.subr.mxu0 0.0
    %268 = vmatpush1.msra.mxu0 0.0
    %269 = vmatprep.subr.mxu0 0.0
    %270 = vmatpush1.msra.mxu0 0.0
    %271 = vmatprep.subr.mxu0 0.0
    %272 = vmatpush1.msra.mxu0 0.0
    %273 = vmatprep.subr.mxu0 0.0
    %274 = vmatpush1.msra.mxu0 0.0
    %275 = vmatprep.subr.mxu0 0.0
    %276 = vmatpush1.msra.mxu0 0.0
    %277 = vmatprep.mubr.f32.mxu0 0.0
    %278 = vmatmul.mubr.f32.gmra.mrb[0].mxu0 %v211
    %v279 = vpop.f32.mrb[0].mxu0
    %v280 = vadd.f32 %v55, %v279
    %v281 = vpop.f32.mrb[0].mxu0
    %282 = vdwg.mxu0
    %v283 = vtanh.pop %v206
    %v284 = vadd.f32 %v283, 3.0
    %v285 = vmul.f32 %v132, %v284
    %v286 = vmul.f32 %v285, %v280
    %v287 = vmul.f32 %v286, 0.027777778
    %vm288 = vcmask 156672
    %289 = vst.msk [vmem:[#allocation7] sm:$0x3] %vm288, %v287
    // Predicated region
    $region30: #{tpu_custom_call.1} parent=1 // pred_check
      _
    $region31: #{tpu_custom_call.1} parent=1 // pred_check_branch
      %291 = sbr.rel (0) target = $region33
    $region32: #{tpu_custom_call.1} parent=1 // pred_region
      %s293 = ssub.s32 32, 32
      %294 = vsyncadd [#allocation4], %s293
      %s296 = sshll.u32 [#allocation7], 4
      %s297 = int_to_ptr.vmem [resolvable:$true] %s296
      %299 = dma.vmem_to_hbm [thread:$0]  %s297, 32, %s5, [#allocation4]
    $region33: #{tpu_custom_call.1} parent=1 // pred_fallthru
      _
    // Predicated region
    $region34: #{tpu_custom_call.1} parent=1 // pred_check
      _
    $region35: #{tpu_custom_call.1} parent=1 // pred_check_branch
      %301 = sbr.rel (0) target = $region37
    $region36: #{tpu_custom_call.1} parent=1 // pred_region
      %302 = dma.done [#allocation4], 32
    $region37: #{tpu_custom_call.1} parent=1 // pred_fallthru
      _
    %303 = vsyncpa [#allocation3], 1
    %304 = vsyncpa [#allocation6], 1
    %305 = vsyncpa [#allocation4], 1

</llo_original>
